<compile_context>
chip_gen: v6e
topology: v6e:2x2x1
jax: 0.10.0
libtpu: 0.0.40
codegen_flags: <defaults>
</compile_context>

<pallas_src>
import functools

import jax
import jax.numpy as jnp
from jax import lax
from jax.experimental import pallas as pl
from jax.experimental.pallas import tpu as pltpu


# ---------------------------------------------------------------------------
# Kernel 1: tiled GCN propagation   out = [relu](A_hat @ Z + b) [@ W_next]
# ---------------------------------------------------------------------------
def gcn_layer_kernel(*refs, relu, fuse_next):
    if fuse_next:
        a_ref, z_ref, b_ref, wn_ref, o_ref, acc_ref = refs
    else:
        a_ref, z_ref, b_ref, o_ref, acc_ref = refs
        wn_ref = None

    k = pl.program_id(1)

    @pl.when(k == 0)
    def _():
        acc_ref[...] = jnp.zeros_like(acc_ref)

    # bf16 operands, f32 accumulation on the MXU.
    acc_ref[...] += jnp.dot(a_ref[...], z_ref[...],
                            preferred_element_type=jnp.float32)

    @pl.when(k == pl.num_programs(1) - 1)
    def _():
        h = acc_ref[...] + b_ref[...]
        if relu:
            h = jnp.maximum(h, 0.0)
        if fuse_next:
            # Fuse the next layer's feature transform so H1 never hits HBM.
            h = jnp.dot(h.astype(jnp.bfloat16), wn_ref[...],
                        preferred_element_type=jnp.float32)
        o_ref[...] = h.astype(o_ref.dtype)


def gcn_propagate(a_bf, z_bf, bias, *, relu, w_next, out_dtype, tm, tk,
                  vmem_limit_bytes):
    n = a_bf.shape[0]
    h = z_bf.shape[1]
    grid = (n // tm, n // tk)

    in_specs = [
        pl.BlockSpec((tm, tk), lambda i, k: (i, k)),    # A_hat row/col tile
        pl.BlockSpec((tk, h), lambda i, k: (k, 0)),     # Z k-slab
        pl.BlockSpec((1, h), lambda i, k: (0, 0)),      # bias (resident)
    ]
    args = [a_bf, z_bf, bias]
    if w_next is not None:
        in_specs.append(pl.BlockSpec((h, h), lambda i, k: (0, 0)))
        args.append(w_next)

    kernel = functools.partial(gcn_layer_kernel, relu=relu,
                               fuse_next=w_next is not None)
    return pl.pallas_call(
        kernel,
        out_shape=jax.ShapeDtypeStruct((n, h), out_dtype),
        grid=grid,
        in_specs=in_specs,
        out_specs=pl.BlockSpec((tm, h), lambda i, k: (i, 0)),
        scratch_shapes=[pltpu.VMEM((tm, h), jnp.float32)],
        compiler_params=pltpu.CompilerParams(
            dimension_semantics=("parallel", "arbitrary"),
            vmem_limit_bytes=vmem_limit_bytes),
    )(*args)


# ---------------------------------------------------------------------------
# Kernel 2: segment mean-pool + final Linear (no dense [G, N] pooling matrix)
# ---------------------------------------------------------------------------
def pool_linear_kernel(h2_ref, bidx_ref, wnode_ref, w3_ref, b3_ref,
                       o_ref, pooled_ref, *, num_graphs):
    i = pl.program_id(0)

    @pl.when(i == 0)
    def _():
        pooled_ref[...] = jnp.zeros_like(pooled_ref)

    bidx = bidx_ref[...]                                     # [1, tm] int32
    gids = lax.broadcasted_iota(jnp.int32, (num_graphs, bidx.shape[1]), 0)
    # One-hot segment matrix scaled by 1/|graph| -> mean pooling, built
    # in-kernel from the per-node graph ids (nothing dense streamed from HBM).
    seg = (bidx == gids).astype(jnp.float32) * wnode_ref[...]   # [G, tm]
    pooled_ref[...] += jnp.dot(seg, h2_ref[...],
                               preferred_element_type=jnp.float32)  # [G, H]

    @pl.when(i == pl.num_programs(0) - 1)
    def _():
        # Final Linear as VPU multiply + lane reduction (no 1-row f32 MXU dot).
        contrib = pooled_ref[...] * w3_ref[...]              # [G, H]
        o_ref[...] = jnp.sum(contrib, axis=1, keepdims=True) + b3_ref[0]


def pool_and_project(h2, batch_row, wnode_row, w3_row, b3_s, num_graphs, *,
                     tm, vmem_limit_bytes):
    n, h = h2.shape
    kernel = functools.partial(pool_linear_kernel, num_graphs=num_graphs)
    out = pl.pallas_call(
        kernel,
        out_shape=jax.ShapeDtypeStruct((num_graphs, 1), jnp.float32),
        grid=(n // tm,),
        in_specs=[
            pl.BlockSpec((tm, h), lambda i: (i, 0)),         # H2 row slab
            pl.BlockSpec((1, tm), lambda i: (0, i)),         # graph ids
            pl.BlockSpec((1, tm), lambda i: (0, i)),         # 1/|graph|
            pl.BlockSpec((1, h), lambda i: (0, 0)),          # w3 row
            pl.BlockSpec(memory_space=pltpu.MemorySpace.SMEM),   # b3 scalar
        ],
        out_specs=pl.BlockSpec((num_graphs, 1), lambda i: (0, 0)),
        scratch_shapes=[pltpu.VMEM((num_graphs, h), jnp.float32)],
        compiler_params=pltpu.CompilerParams(
            dimension_semantics=("arbitrary",),   # sequential accumulation
            vmem_limit_bytes=vmem_limit_bytes),
    )(h2, batch_row, wnode_row, w3_row, b3_s)
    return out.reshape(num_graphs)


# ---------------------------------------------------------------------------
# Full forward (matches GNN.forward with use_edge_attr=False)
# ---------------------------------------------------------------------------
def gnn_forward_pallas(a_hat_bf, x, w1, b1, w2, b2, w3, b3, batch, num_graphs,
                       *, tile_rows=128, vmem_limit_bytes=32 * 1024 * 1024):
    # tile_rows / vmem_limit_bytes: raise to >=512 rows + larger limit on
    # v5e/v6e (128 MiB VMEM); keep ~128-256 rows on v7x (64 MiB VMEM).
    n = x.shape[0]
    h = w1.shape[1]
    tm = tile_rows if n % tile_rows == 0 else n
    tk = tm

    # Layer-1 feature transform in the wrapper (F_in is tiny -> would pad to
    # 128 lanes and waste a near-empty MXU pass per tile inside the kernel).
    z1 = jnp.dot(x, w1).astype(jnp.bfloat16)                 # [N, H]

    # Layer 1 (+ fused W2): Z2 = relu(A_hat @ Z1 + b1) @ W2, written bf16.
    z2 = gcn_propagate(a_hat_bf, z1, b1.astype(jnp.float32),
                       relu=True, w_next=w2.astype(jnp.bfloat16),
                       out_dtype=jnp.bfloat16, tm=tm, tk=tk,
                       vmem_limit_bytes=vmem_limit_bytes)

    # Layer 2: H2 = A_hat @ Z2 + b2 (f32 for the pooling / final linear).
    h2 = gcn_propagate(a_hat_bf, z2, b2.astype(jnp.float32),
                       relu=False, w_next=None,
                       out_dtype=jnp.float32, tm=tm, tk=tk,
                       vmem_limit_bytes=vmem_limit_bytes)

    # Segment mean-pool weights (empty graphs -> 0, same as max(count, 1)).
    counts = jnp.zeros((num_graphs,), jnp.float32).at[batch].add(1.0)
    inv_counts = jnp.where(counts > 0, 1.0 / counts, 0.0)
    wnode_row = inv_counts[batch].reshape(1, n).astype(jnp.float32)
    batch_row = batch.reshape(1, n).astype(jnp.int32)
    w3_row = w3.reshape(1, h).astype(jnp.float32)
    b3_s = b3.reshape(1).astype(jnp.float32)

    return pool_and_project(h2, batch_row, wnode_row, w3_row, b3_s, num_graphs,
                            tm=tm, vmem_limit_bytes=vmem_limit_bytes)


# ---------------------------------------------------------------------------
# Glue: GCN-normalized dense adjacency (PyG GCNConv semantics, self-loops).
# ---------------------------------------------------------------------------
def gcn_norm_dense(edge_index, num_nodes, out_dtype=jnp.bfloat16):
    # edge_index[0]=source j, edge_index[1]=target i (message j -> i lands at
    # adj[i, j]); duplicate edges accumulate (scatter-add semantics).
    src, dst = edge_index[0], edge_index[1]
    adj = jnp.zeros((num_nodes, num_nodes), jnp.float32).at[dst, src].add(1.0)
    adj = adj + jnp.eye(num_nodes, dtype=jnp.float32)        # add self-loops
    deg = adj.sum(axis=1)
    d_inv_sqrt = jnp.where(deg > 0, 1.0 / jnp.sqrt(deg), 0.0)
    # Cast in the same fused expression -> no extra full-precision copy kept.
    # Use out_dtype=jnp.float32 if accuracy at high degree / large N is tight.
    return (d_inv_sqrt[:, None] * adj * d_inv_sqrt[None, :]).astype(out_dtype)


# ---------------------------------------------------------------------------
# Pure-JAX references.
# ---------------------------------------------------------------------------
def _mean_pool_matrix(batch, num_graphs):
    onehot = (batch[None, :] == jnp.arange(num_graphs)[:, None]).astype(jnp.float32)
    counts = jnp.maximum(onehot.sum(axis=1, keepdims=True), 1.0)
    return onehot / counts


def gnn_forward_ref_mixed(a_hat_bf, x, w1, b1, w2, b2, w3, b3, batch, num_graphs):
    """Mirrors the kernel's bf16-operand / f32-accumulation path."""
    z1 = jnp.dot(x, w1).astype(jnp.bfloat16)
    h1 = jnp.maximum(
        jnp.dot(a_hat_bf, z1, preferred_element_type=jnp.float32) + b1, 0.0)
    z2 = jnp.dot(h1.astype(jnp.bfloat16), w2.astype(jnp.bfloat16),
                 preferred_element_type=jnp.float32).astype(jnp.bfloat16)
    h2 = jnp.dot(a_hat_bf, z2, preferred_element_type=jnp.float32) + b2
    pooled = _mean_pool_matrix(batch, num_graphs) @ h2
    return (pooled @ w3 + b3).reshape(-1)


def gnn_forward_ref_f32(a_hat_f32, x, w1, b1, w2, b2, w3, b3, batch, num_graphs):
    h1 = jnp.maximum(a_hat_f32 @ (x @ w1) + b1, 0.0)
    h2 = a_hat_f32 @ (h1 @ w2) + b2
    pooled = _mean_pool_matrix(batch, num_graphs) @ h2
    return (pooled @ w3 + b3).reshape(-1)


if __name__ == "__main__":
    # Small shapes consistent with the module; N=256 gives a real (2, 2) grid
    # so the accumulator / pl.when / parallel-row-axis path is exercised.
    node_input_dim = 4
    hidden_dim = 32
    num_graphs = 8
    nodes_per_graph = 32
    num_nodes = num_graphs * nodes_per_graph          # 256

    key = jax.random.PRNGKey(0)
    k_x, k_w1, k_b1, k_w2, k_b2, k_w3, k_b3 = jax.random.split(key, 7)

    x = jax.random.normal(k_x, (num_nodes, node_input_dim), jnp.float32)

    # Deterministic graph: a bidirectional ring inside each graph.
    src_list, dst_list = [], []
    for g in range(num_graphs):
        base = g * nodes_per_graph
        for i in range(nodes_per_graph):
            a = base + i
            b = base + (i + 1) % nodes_per_graph
            src_list += [a, b]
            dst_list += [b, a]
    edge_index = jnp.array([src_list, dst_list], dtype=jnp.int32)   # [2, E]

    batch = jnp.repeat(jnp.arange(num_graphs, dtype=jnp.int32), nodes_per_graph)

    # Deterministic synthetic parameters (shapes match the nn.Module).
    w1 = 0.1 * jax.random.normal(k_w1, (node_input_dim, hidden_dim), jnp.float32)
    b1 = 0.1 * jax.random.normal(k_b1, (1, hidden_dim), jnp.float32)
    w2 = 0.1 * jax.random.normal(k_w2, (hidden_dim, hidden_dim), jnp.float32)
    b2 = 0.1 * jax.random.normal(k_b2, (1, hidden_dim), jnp.float32)
    w3 = 0.1 * jax.random.normal(k_w3, (hidden_dim, 1), jnp.float32)
    b3 = 0.1 * jax.random.normal(k_b3, (1, 1), jnp.float32)

    a_hat_bf = gcn_norm_dense(edge_index, num_nodes, out_dtype=jnp.bfloat16)

    out = gnn_forward_pallas(a_hat_bf, x, w1, b1, w2, b2, w3, b3, batch,
                             num_graphs)
    out = jax.block_until_ready(out)
    assert out.shape == (num_graphs,)

    # Tight check against the same bf16/f32 mixed-precision path.
    ref_mixed = gnn_forward_ref_mixed(a_hat_bf, x, w1, b1, w2, b2, w3, b3,
                                      batch, num_graphs)
    assert jnp.allclose(out, ref_mixed, atol=2e-3, rtol=2e-2), (out, ref_mixed)

    # Loose sanity check against the full-f32 reference (bf16 operand rounding).
    a_hat_f32 = gcn_norm_dense(edge_index, num_nodes, out_dtype=jnp.float32)
    ref_f32 = gnn_forward_ref_f32(a_hat_f32, x, w1, b1, w2, b2, w3, b3,
                                  batch, num_graphs)
    assert jnp.allclose(out, ref_f32, atol=5e-2, rtol=5e-2), (out, ref_f32)

    print("KERNEL_OK")
</pallas_src>

<mosaic_0001>
module attributes {stable_mosaic.version = 11 : i64} {
  func.func @gcn_layer_kernel(%arg0: i32, %arg1: i32, %arg2: memref<128x128xbf16, #tpu.memory_space<vmem>>, %arg3: memref<128x32xbf16, #tpu.memory_space<vmem>>, %arg4: memref<1x32xf32, #tpu.memory_space<vmem>>, %arg5: memref<32x32xbf16, #tpu.memory_space<vmem>>, %arg6: memref<128x32xbf16, #tpu.memory_space<vmem>>, %arg7: memref<128x32xf32, #tpu.memory_space<vmem>>) attributes {dimension_semantics = [#tpu.dimension_semantics<parallel>, #tpu.dimension_semantics<arbitrary>], iteration_bounds = array<i64: 2, 2>, scalar_prefetch = 0 : i64, scratch_operands = 1 : i64, tpu.core_type = #tpu.core_type<tc>, window_params = [{transform_indices = @transform_0, window_bounds = array<i64: 128, 128>}, {transform_indices = @transform_1, window_bounds = array<i64: 128, 32>}, {pipeline_mode = #tpu.pipeline_mode<synchronous>, transform_indices = @transform_2, window_bounds = array<i64: 1, 32>}, {pipeline_mode = #tpu.pipeline_mode<synchronous>, transform_indices = @transform_3, window_bounds = array<i64: 32, 32>}, {transform_indices = @transform_4, window_bounds = array<i64: 128, 32>}]} {
    %c0_i32 = arith.constant 0 : i32
    %0 = arith.cmpi eq, %arg1, %c0_i32 : i32
    %1 = arith.extui %0 : i1 to i32
    %c0_i32_0 = arith.constant 0 : i32
    %2 = arith.cmpi ne, %1, %c0_i32_0 : i32
    scf.if %2 {
      %cst_9 = arith.constant 0.000000e+00 : f32
      %12 = vector.broadcast %cst_9 : f32 to vector<128x32xf32>
      %c0_10 = arith.constant 0 : index
      %c0_11 = arith.constant 0 : index
      %13 = vector.load %arg7[%c0_10, %c0_11] : memref<128x32xf32, #tpu.memory_space<vmem>>, vector<128x32xf32>
      tpu.vector_store %arg7[%c0_10, %c0_11], %12 {strides = array<i32>} : memref<128x32xf32, #tpu.memory_space<vmem>>, vector<128x32xf32>,
    } else {
    }
    %c0 = arith.constant 0 : index
    %c0_1 = arith.constant 0 : index
    %3 = vector.load %arg7[%c0, %c0_1] : memref<128x32xf32, #tpu.memory_space<vmem>>, vector<128x32xf32>
    %c0_2 = arith.constant 0 : index
    %c0_3 = arith.constant 0 : index
    %4 = vector.load %arg2[%c0_2, %c0_3] : memref<128x128xbf16, #tpu.memory_space<vmem>>, vector<128x128xbf16>
    %c0_4 = arith.constant 0 : index
    %c0_5 = arith.constant 0 : index
    %5 = vector.load %arg3[%c0_4, %c0_5] : memref<128x32xbf16, #tpu.memory_space<vmem>>, vector<128x32xbf16>
    %cst = arith.constant dense<0.000000e+00> : vector<128x32xf32>
    %6 = tpu.matmul %4, %5, %cst {dimension_numbers = #tpu.dot_dimension_numbers<[1], [0], [0], [1], [0, 0, 1, 1], [], []>} : vector<128x128xbf16>, vector<128x32xbf16>, vector<128x32xf32> -> vector<128x32xf32>
    %7 = arith.addf %3, %6 : vector<128x32xf32>
    %c0_6 = arith.constant 0 : index
    %c0_7 = arith.constant 0 : index
    %8 = vector.load %arg7[%c0_6, %c0_7] : memref<128x32xf32, #tpu.memory_space<vmem>>, vector<128x32xf32>
    tpu.vector_store %arg7[%c0_6, %c0_7], %7 {strides = array<i32>} : memref<128x32xf32, #tpu.memory_space<vmem>>, vector<128x32xf32>,
    %c1_i32 = arith.constant 1 : i32
    %9 = arith.cmpi eq, %arg1, %c1_i32 : i32
    %10 = arith.extui %9 : i1 to i32
    %c0_i32_8 = arith.constant 0 : i32
    %11 = arith.cmpi ne, %10, %c0_i32_8 : i32
    scf.if %11 {
      %c0_9 = arith.constant 0 : index
      %c0_10 = arith.constant 0 : index
      %12 = vector.load %arg7[%c0_9, %c0_10] : memref<128x32xf32, #tpu.memory_space<vmem>>, vector<128x32xf32>
      %c0_11 = arith.constant 0 : index
      %c0_12 = arith.constant 0 : index
      %13 = vector.load %arg4[%c0_11, %c0_12] : memref<1x32xf32, #tpu.memory_space<vmem>>, vector<1x32xf32>
      %14 = vector.broadcast %13 : vector<1x32xf32> to vector<128x32xf32>
      %15 = arith.addf %12, %14 : vector<128x32xf32>
      %cst_13 = arith.constant 0.000000e+00 : f32
      %16 = vector.broadcast %cst_13 : f32 to vector<128x32xf32>
      %17 = arith.maximumf %15, %16 : vector<128x32xf32>
      %18 = arith.truncf %17 : vector<128x32xf32> to vector<128x32xbf16>
      %c0_14 = arith.constant 0 : index
      %c0_15 = arith.constant 0 : index
      %19 = vector.load %arg5[%c0_14, %c0_15] : memref<32x32xbf16, #tpu.memory_space<vmem>>, vector<32x32xbf16>
      %cst_16 = arith.constant dense<0.000000e+00> : vector<128x32xf32>
      %20 = tpu.matmul %18, %19, %cst_16 {dimension_numbers = #tpu.dot_dimension_numbers<[1], [0], [0], [1], [0, 0, 1, 1], [], []>} : vector<128x32xbf16>, vector<32x32xbf16>, vector<128x32xf32> -> vector<128x32xf32>
      %21 = arith.truncf %20 : vector<128x32xf32> to vector<128x32xbf16>
      %c0_17 = arith.constant 0 : index
      %c0_18 = arith.constant 0 : index
      %22 = vector.load %arg6[%c0_17, %c0_18] : memref<128x32xbf16, #tpu.memory_space<vmem>>, vector<128x32xbf16>
      tpu.vector_store %arg6[%c0_17, %c0_18], %21 {strides = array<i32>} : memref<128x32xbf16, #tpu.memory_space<vmem>>, vector<128x32xbf16>,
    } else {
    }
    return
  }
  func.func @transform_0(%arg0: i32, %arg1: i32) -> (i32, i32) {
    %c0_i32 = arith.constant 0 : i32
    return %arg0, %arg1 : i32, i32
  }
  func.func @transform_1(%arg0: i32, %arg1: i32) -> (i32, i32) {
    %c0_i32 = arith.constant 0 : i32
    %c0_i32_0 = arith.constant 0 : i32
    return %arg1, %c0_i32 : i32, i32
  }
  func.func @transform_2(%arg0: i32, %arg1: i32) -> (i32, i32) {
    %c0_i32 = arith.constant 0 : i32
    %c0_i32_0 = arith.constant 0 : i32
    %c0_i32_1 = arith.constant 0 : i32
    return %c0_i32, %c0_i32_0 : i32, i32
  }
  func.func @transform_3(%arg0: i32, %arg1: i32) -> (i32, i32) {
    %c0_i32 = arith.constant 0 : i32
    %c0_i32_0 = arith.constant 0 : i32
    %c0_i32_1 = arith.constant 0 : i32
    return %c0_i32, %c0_i32_0 : i32, i32
  }
  func.func @transform_4(%arg0: i32, %arg1: i32) -> (i32, i32) {
    %c0_i32 = arith.constant 0 : i32
    %c0_i32_0 = arith.constant 0 : i32
    return %arg0, %c0_i32 : i32, i32
  }
}

</mosaic_0001>

<llo_original>
// kernel: tpu_custom_call.1
$region0: #{tpu_custom_call.1}
  #allocation0 [shape = 'u32[]', space=smem, size = 0x4, offset = 0x4, fixed_abs, tag = 'smem constant byte address 0x4 - core index']
  #allocation1 [shape = 'u32[144,128]{1,0:T(1,128)}', space=vmem, size = 0x12000, scoped, tag = 'internal scratch']
  #allocation2 [shape = 'f32[128,32]{1,0:T(8,128)}', space=vmem, size = 0x10000, scoped, tag = 'scratch operand']
  %s0 = inlined_call_operand.hbm [shape: bf16[256,256], index: 0, kind: input, shape index: {}]
  %s1 = inlined_call_operand.vmem [shape: bf16[256,32], index: 1, kind: input, shape index: {}]
  %s2 = inlined_call_operand.vmem [shape: f32[1,32], index: 2, kind: input, shape index: {}]
  %s3 = inlined_call_operand.vmem [shape: bf16[32,32], index: 3, kind: input, shape index: {}]
  %s4 = inlined_call_operand.vmem [shape: bf16[256,32], index: 4, kind: output, shape index: {}]
  %s5 = sld [smem:[#allocation0]]
  $region61: #{tpu_custom_call.1} parent=0
    _
  %s7 = ssub.s32 1, %s5
  %s8 = scalar_select 0, %s7, %s5
  $region1: #{tpu_custom_call.1} parent=0
    #allocation3 [shape = 'u8[65536]{0}', space=vmem, size = 0x10000, scoped, tag = 'input window, operand 0']
    #allocation4 [shape = 's32[2]{0}', space=sflag, size = 0x8, scoped, tag = 'scoped memory for tpu_custom_call.1']
    %9 = vsyncpa [#allocation4], 0
    %s10 = scalar_lea.sflag [#allocation4], 1
    %11 = vsyncpa %s10, 0
    loop: start=0, step=1, limit=6
    $region2: #{tpu_custom_call.1} parent=1 // loop_pre_header
      _
    $region3: #{tpu_custom_call.1} parent=1 // loop_header
      %s13 = sphi 0, %s17
      %p14 = scmp.ge.s32.totalorder %s13, 6
      %s20 = sphi 0, %s32
      %s21 = sphi 0, %s28
      %s22 = sphi 0, %s20
      %s23 = sphi 0, %s21
      %s24 = sphi 0, %s22
      %s25 = sphi 0, %s23
      %s37 = sphi 0, %s39
      %s40 = sphi 0, %s37
      %s41 = sphi 0, %s40
      %s57 = sphi 0, %s41
      %s63 = sphi 0, %s65
      %s66 = sphi 0, %s63
      %s67 = sphi 0, %s66
      %s83 = sphi 0, %s67
      %s87 = sphi 0, %s87
      %s89 = sphi 0, %s87
      %s90 = sphi 0, %s89
      %s104 = sphi 0, %s90
      %s108 = sphi 0, %s108
      %s110 = sphi 0, %s108
      %s111 = sphi 0, %s110
      %s125 = sphi 0, %s111
      %s131 = sphi 0, %s133
      %s134 = sphi 0, %s131
      %s135 = sphi 0, %s134
      %s151 = sphi 0, %s135
    $region4: #{tpu_custom_call.1} parent=1 // loop_header_branch
      %16 = sbr.rel (%p14) target = $region8
    $region5: #{tpu_custom_call.1} parent=1 // loop_body
      %s18 = ssub.s32 %s13, 1
      %s19 = ssub.s32 %s13, 2
      %s26 = sadd.s32 1, %s21
      %p27 = scmp.ge.s32.totalorder %s26, 2
      %s28 = scalar_select %p27, 0, %s26
      %s29 = sadd.s32 1, %s20
      %s30 = scalar_select %p27, %s29, %s20
      %p31 = scmp.ge.s32.totalorder %s30, 2
      %s32 = scalar_select %p31, 0, %s30
      %s33 = ssub.s32 %s20, %s32
      %s34 = ssub.s32 %s21, %s28
      %s35 = sor.u32 %s33, %s34
      %p36 = scmp.eq.s32.totalorder %s35, 0
      %s38 = sadd.s32 %s37, 1
      %s39 = scalar_select %p36, %s37, %s38
      %p42 = pneg %p36
      %p43 = scmp.eq.s32.totalorder %s13, 3
      %p44 = por %p42, %p43
      %p45 = scmp.ne.s32.totalorder %s37, %s40
      %p46 = scmp.eq.s32.totalorder %s13, 0
      %p47 = por %p45, %p46
      %p48 = scmp.ne.s32.totalorder %s37, %s40
      %p49 = scmp.eq.s32.totalorder %s18, 3
      %p50 = por %p48, %p49
      %p51 = scmp.ne.s32.totalorder %s40, %s41
      %p52 = scmp.eq.s32.totalorder %s18, 0
      %p53 = por %p51, %p52
      %p54 = scmp.ne.s32.totalorder %s40, %s41
      %p55 = scmp.eq.s32.totalorder %s19, 3
      %p56 = por %p54, %p55
      %p58 = scmp.ne.s32.totalorder %s41, %s57
      %p59 = scmp.eq.s32.totalorder %s19, 0
      %p60 = por %p58, %p59
      %s61 = ssub.s32 %s21, %s28
      %p62 = scmp.eq.s32.totalorder %s61, 0
      %s64 = sadd.s32 %s63, 1
      %s65 = scalar_select %p62, %s63, %s64
      %p68 = pneg %p62
      %p69 = scmp.eq.s32.totalorder %s13, 3
      %p70 = por %p68, %p69
      %p71 = scmp.ne.s32.totalorder %s63, %s66
      %p72 = scmp.eq.s32.totalorder %s13, 0
      %p73 = por %p71, %p72
      %p74 = scmp.ne.s32.totalorder %s63, %s66
      %p75 = scmp.eq.s32.totalorder %s18, 3
      %p76 = por %p74, %p75
      %p77 = scmp.ne.s32.totalorder %s66, %s67
      %p78 = scmp.eq.s32.totalorder %s18, 0
      %p79 = por %p77, %p78
      %p80 = scmp.ne.s32.totalorder %s66, %s67
      %p81 = scmp.eq.s32.totalorder %s19, 3
      %p82 = por %p80, %p81
      %p84 = scmp.ne.s32.totalorder %s67, %s83
      %p85 = scmp.eq.s32.totalorder %s19, 0
      %p86 = por %p84, %p85
      %s88 = sadd.s32 %s87, 1
      %p91 = scmp.eq.s32.totalorder %s13, 3
      %p92 = scmp.ne.s32.totalorder %s87, %s89
      %p93 = scmp.eq.s32.totalorder %s13, 0
      %p94 = por %p92, %p93
      %p95 = scmp.ne.s32.totalorder %s87, %s89
      %p96 = scmp.eq.s32.totalorder %s18, 3
      %p97 = por %p95, %p96
      %p98 = scmp.ne.s32.totalorder %s89, %s90
      %p99 = scmp.eq.s32.totalorder %s18, 0
      %p100 = por %p98, %p99
      %p101 = scmp.ne.s32.totalorder %s89, %s90
      %p102 = scmp.eq.s32.totalorder %s19, 3
      %p103 = por %p101, %p102
      %p105 = scmp.ne.s32.totalorder %s90, %s104
      %p106 = scmp.eq.s32.totalorder %s19, 0
      %p107 = por %p105, %p106
      %s109 = sadd.s32 %s108, 1
      %p112 = scmp.eq.s32.totalorder %s13, 3
      %p113 = scmp.ne.s32.totalorder %s108, %s110
      %p114 = scmp.eq.s32.totalorder %s13, 0
      %p115 = por %p113, %p114
      %p116 = scmp.ne.s32.totalorder %s108, %s110
      %p117 = scmp.eq.s32.totalorder %s18, 3
      %p118 = por %p116, %p117
      %p119 = scmp.ne.s32.totalorder %s110, %s111
      %p120 = scmp.eq.s32.totalorder %s18, 0
      %p121 = por %p119, %p120
      %p122 = scmp.ne.s32.totalorder %s110, %s111
      %p123 = scmp.eq.s32.totalorder %s19, 3
      %p124 = por %p122, %p123
      %p126 = scmp.ne.s32.totalorder %s111, %s125
      %p127 = scmp.eq.s32.totalorder %s19, 0
      %p128 = por %p126, %p127
      %s129 = ssub.s32 %s20, %s32
      %p130 = scmp.eq.s32.totalorder %s129, 0
      %s132 = sadd.s32 %s131, 1
      %s133 = scalar_select %p130, %s131, %s132
      %p136 = pneg %p130
      %p137 = scmp.eq.s32.totalorder %s13, 3
      %p138 = por %p136, %p137
      %p139 = scmp.ne.s32.totalorder %s131, %s134
      %p140 = scmp.eq.s32.totalorder %s13, 0
      %p141 = por %p139, %p140
      %p142 = scmp.ne.s32.totalorder %s131, %s134
      %p143 = scmp.eq.s32.totalorder %s18, 3
      %p144 = por %p142, %p143
      %p145 = scmp.ne.s32.totalorder %s134, %s135
      %p146 = scmp.eq.s32.totalorder %s18, 0
      %p147 = por %p145, %p146
      %p148 = scmp.ne.s32.totalorder %s134, %s135
      %p149 = scmp.eq.s32.totalorder %s19, 3
      %p150 = por %p148, %p149
      %p152 = scmp.ne.s32.totalorder %s135, %s151
      %p153 = scmp.eq.s32.totalorder %s19, 0
      %p154 = por %p152, %p153
      %p155 = scmp.le.s32.totalorder 1, %s13
      %p156 = scmp.lt.s32.totalorder %s13, 5
      %p157 = pnand %p155, %p156
      %p158 = pneg %p157
      // Predicated region
      $region9: #{tpu_custom_call.1} parent=5 // pred_check
        _
      $region10: #{tpu_custom_call.1} parent=5 // pred_check_branch
        %160 = sbr.rel (%p157) target = $region12
      $region11: #{tpu_custom_call.1} parent=5 // pred_region
        %s161 = ssub.s32 %s13, 1
        // Predicated region
        $region13: #{tpu_custom_call.1} parent=11 // pred_check
          %p162 = pneg %p100
        $region14: #{tpu_custom_call.1} parent=11 // pred_check_branch
          %164 = sbr.rel (%p162) target = $region16
        $region15: #{tpu_custom_call.1} parent=11 // pred_region
          _
        $region16: #{tpu_custom_call.1} parent=11 // pred_fallthru
          _
        // Predicated region
        $region17: #{tpu_custom_call.1} parent=11 // pred_check
          %p165 = pneg %p121
        $region18: #{tpu_custom_call.1} parent=11 // pred_check_branch
          %167 = sbr.rel (%p165) target = $region20
        $region19: #{tpu_custom_call.1} parent=11 // pred_region
          _
        $region20: #{tpu_custom_call.1} parent=11 // pred_fallthru
          _
      $region12: #{tpu_custom_call.1} parent=5 // pred_fallthru
        _
      %p168 = scmp.lt.s32.totalorder %s13, 4
      // Predicated region
      $region21: #{tpu_custom_call.1} parent=5 // pred_check
        %p169 = pneg %p168
      $region22: #{tpu_custom_call.1} parent=5 // pred_check_branch
        %171 = sbr.rel (%p169) target = $region24
      $region23: #{tpu_custom_call.1} parent=5 // pred_region
        // Predicated region
        $region25: #{tpu_custom_call.1} parent=23 // pred_check
          %p172 = pneg %p47
        $region26: #{tpu_custom_call.1} parent=23 // pred_check_branch
          %174 = sbr.rel (%p172) target = $region28
        $region27: #{tpu_custom_call.1} parent=23 // pred_region
          %s175 = sand.u32 %s37, 1
          %s176 = scalar_lea.sflag [#allocation4], %s175
          %s177 = sand.u32 %s37, 1
          %s178 = smul.addr %s177, 64
          %s179 = scalar_lea.vmem [#allocation3], %s178
          %s180 = smul.u32 16, %s20
          %s182 = ssub.s32 1024, 1024
          %183 = vsyncadd %s176, %s182
          %s184 = smul.addr %s180, 2
          %s185 = sadd.s32 %s21, %s184
          %s186 = smul.addr %s185, 64
          %s187 = scalar_lea.hbm %s0, %s186
          %s188 = sshll.u32 %s179, 4
          %s189 = int_to_ptr.vmem [resolvable:$true] %s188
          %194 = dma.hbm_to_vmem [thread:$0]  %s187, 1024, %s189, %s176, 128, 64, 4
        $region28: #{tpu_custom_call.1} parent=23 // pred_fallthru
          _
        // Predicated region
        $region29: #{tpu_custom_call.1} parent=23 // pred_check
          %p195 = pneg %p73
        $region30: #{tpu_custom_call.1} parent=23 // pred_check_branch
          %197 = sbr.rel (%p195) target = $region32
        $region31: #{tpu_custom_call.1} parent=23 // pred_region
          %s198 = smul.u32 16, %s21
          %p199 = scmp.lt.s32.totalorder %s198, 31
          %s200 = scalar_select %p199, %s198, 31
          %s201 = smul.addr %s200, 4
          %s202 = scalar_lea.vmem %s1, %s201
          %s203 = smul.u32 16, %s21
        $region32: #{tpu_custom_call.1} parent=23 // pred_fallthru
          _
      $region24: #{tpu_custom_call.1} parent=5 // pred_fallthru
        _
      %p204 = scmp.le.s32.totalorder 1, %s13
      %p205 = scmp.lt.s32.totalorder %s13, 5
      %p206 = pnand %p204, %p205
      %p207 = pneg %p206
      // Predicated region
      $region33: #{tpu_custom_call.1} parent=5 // pred_check
        _
      $region34: #{tpu_custom_call.1} parent=5 // pred_check_branch
        %209 = sbr.rel (%p206) target = $region36
      $region35: #{tpu_custom_call.1} parent=5 // pred_region
        %s210 = ssub.s32 %s13, 1
        %s211 = sand.u32 %s40, 1
        %s212 = scalar_lea.sflag [#allocation4], %s211
        %s213 = sand.u32 %s40, 1
        %s214 = smul.addr %s213, 64
        %s215 = scalar_lea.vmem [#allocation3], %s214
        // Predicated region
        $region37: #{tpu_custom_call.1} parent=35 // pred_check
          %p216 = pneg %p53
        $region38: #{tpu_custom_call.1} parent=35 // pred_check_branch
          %218 = sbr.rel (%p216) target = $region40
        $region39: #{tpu_custom_call.1} parent=35 // pred_region
          %219 = dma.done %s212, 1024
        $region40: #{tpu_custom_call.1} parent=35 // pred_fallthru
          _
        %s220 = sand.u32 %s40, 1
        %s221 = scalar_lea.sflag [#allocation4], %s220
        %s222 = sand.u32 %s40, 1
        %s223 = smul.addr %s222, 64
        %s224 = scalar_lea.vmem [#allocation3], %s223
        %p225 = pneg %p53
        %p226 = pneg %p50
        %s227 = smul.u32 16, %s23
        %p228 = scmp.lt.s32.totalorder %s227, 31
        %s229 = scalar_select %p228, %s227, 31
        %s230 = smul.addr %s229, 4
        %s231 = scalar_lea.vmem %s1, %s230
        %p232 = pneg %p79
        %p233 = pneg %p76
        %p234 = pneg %p100
        %p235 = pneg %p97
        %p236 = pneg %p121
        %p237 = pneg %p118
        %p238 = pneg %p147
        %p239 = pneg %p144
        %s240 = smul.u32 16, %s22
        %p241 = scmp.lt.s32.totalorder %s240, 31
        %s242 = scalar_select %p241, %s240, 31
        %s243 = smul.addr %s242, 4
        %s244 = scalar_lea.vmem %s4, %s243
        %s245 = smul.u32 16, %s22
        %s246 = smul.u32 16, %s23
        %p247 = scmp.lt.s32.totalorder %s246, 31
        %s248 = scalar_select %p247, %s246, 31
        %s249 = smul.addr %s248, 4
        %s250 = scalar_lea.vmem %s1, %s249
        %s251 = smul.u32 16, %s23
        %s252 = smul.u32 16, %s22
        %p253 = scmp.lt.s32.totalorder %s252, 31
        %s254 = scalar_select %p253, %s252, 31
        %s255 = smul.addr %s254, 4
        %s256 = scalar_lea.vmem %s4, %s255
        %s257 = smul.u32 16, %s22
        %p259 = scmp.eq.s32.totalorder %s23, 0
        // Predicated region
        $region41: #{tpu_custom_call.1} parent=35 // pred_check
          %p260 = pneg %p259
        $region42: #{tpu_custom_call.1} parent=35 // pred_check_branch
          %262 = sbr.rel (%p260) target = $region44
        $region43: #{tpu_custom_call.1} parent=35 // pred_region
          %vm263 = vcmask 261120
          %264 = vst.msk [vmem:[#allocation2] sm:$0xff] %vm263, 0.0
          %265 = vst.msk [vmem:[#allocation2 + $0x8] sm:$0xff] %vm263, 0.0
          %266 = vst.msk [vmem:[#allocation2 + $0x10] sm:$0xff] %vm263, 0.0
          %267 = vst.msk [vmem:[#allocation2 + $0x18] sm:$0xff] %vm263, 0.0
          %268 = vst.msk [vmem:[#allocation2 + $0x20] sm:$0xff] %vm263, 0.0
          %269 = vst.msk [vmem:[#allocation2 + $0x28] sm:$0xff] %vm263, 0.0
          %270 = vst.msk [vmem:[#allocation2 + $0x30] sm:$0xff] %vm263, 0.0
          %271 = vst.msk [vmem:[#allocation2 + $0x38] sm:$0xff] %vm263, 0.0
          %272 = vst.msk [vmem:[#allocation2 + $0x40] sm:$0xff] %vm263, 0.0
          %273 = vst.msk [vmem:[#allocation2 + $0x48] sm:$0xff] %vm263, 0.0
          %274 = vst.msk [vmem:[#allocation2 + $0x50] sm:$0xff] %vm263, 0.0
          %275 = vst.msk [vmem:[#allocation2 + $0x58] sm:$0xff] %vm263, 0.0
          %276 = vst.msk [vmem:[#allocation2 + $0x60] sm:$0xff] %vm263, 0.0
          %277 = vst.msk [vmem:[#allocation2 + $0x68] sm:$0xff] %vm263, 0.0
          %278 = vst.msk [vmem:[#allocation2 + $0x70] sm:$0xff] %vm263, 0.0
          %279 = vst.msk [vmem:[#allocation2 + $0x78] sm:$0xff] %vm263, 0.0
        $region44: #{tpu_custom_call.1} parent=35 // pred_fallthru
          _
        %v280 = vld [vmem:[#allocation2] sm:$0xff]
        %v281 = vld [vmem:[#allocation2 + $0x8] sm:$0xff]
        %v282 = vld [vmem:[#allocation2 + $0x10] sm:$0xff]
        %v283 = vld [vmem:[#allocation2 + $0x18] sm:$0xff]
        %v284 = vld [vmem:[#allocation2 + $0x20] sm:$0xff]
        %v285 = vld [vmem:[#allocation2 + $0x28] sm:$0xff]
        %v286 = vld [vmem:[#allocation2 + $0x30] sm:$0xff]
        %v287 = vld [vmem:[#allocation2 + $0x38] sm:$0xff]
        %v288 = vld [vmem:[#allocation2 + $0x40] sm:$0xff]
        %v289 = vld [vmem:[#allocation2 + $0x48] sm:$0xff]
        %v290 = vld [vmem:[#allocation2 + $0x50] sm:$0xff]
        %v291 = vld [vmem:[#allocation2 + $0x58] sm:$0xff]
        %v292 = vld [vmem:[#allocation2 + $0x60] sm:$0xff]
        %v293 = vld [vmem:[#allocation2 + $0x68] sm:$0xff]
        %v294 = vld [vmem:[#allocation2 + $0x70] sm:$0xff]
        %v295 = vld [vmem:[#allocation2 + $0x78] sm:$0xff]
        %v296 = vld [vmem:[%s215] sm:$0xf]
        %v297 = vld [vmem:[%s215 + $0x4] sm:$0xf]
        %v298 = vld [vmem:[%s215 + $0x8] sm:$0xf]
        %v299 = vld [vmem:[%s215 + $0xc] sm:$0xf]
        %v300 = vld [vmem:[%s215 + $0x10] sm:$0xf]
        %v301 = vld [vmem:[%s215 + $0x14] sm:$0xf]
        %v302 = vld [vmem:[%s215 + $0x18] sm:$0xf]
        %v303 = vld [vmem:[%s215 + $0x1c] sm:$0xf]
        %v304 = vld [vmem:[%s215 + $0x20] sm:$0xf]
        %v305 = vld [vmem:[%s215 + $0x24] sm:$0xf]
        %v306 = vld [vmem:[%s215 + $0x28] sm:$0xf]
        %v307 = vld [vmem:[%s215 + $0x2c] sm:$0xf]
        %v308 = vld [vmem:[%s215 + $0x30] sm:$0xf]
        %v309 = vld [vmem:[%s215 + $0x34] sm:$0xf]
        %v310 = vld [vmem:[%s215 + $0x38] sm:$0xf]
        %v311 = vld [vmem:[%s215 + $0x3c] sm:$0xf]
        %v312 = vld [vmem:[%s250] sm:$0xf]
        %v313 = vld [vmem:[%s250 + $0x4] sm:$0xf]
        %v314 = vld [vmem:[%s250 + $0x8] sm:$0xf]
        %v315 = vld [vmem:[%s250 + $0xc] sm:$0xf]
        %v316 = vld [vmem:[%s250 + $0x10] sm:$0xf]
        %v317 = vld [vmem:[%s250 + $0x14] sm:$0xf]
        %v318 = vld [vmem:[%s250 + $0x18] sm:$0xf]
        %v319 = vld [vmem:[%s250 + $0x1c] sm:$0xf]
        %v320 = vld [vmem:[%s250 + $0x20] sm:$0xf]
        %v321 = vld [vmem:[%s250 + $0x24] sm:$0xf]
        %v322 = vld [vmem:[%s250 + $0x28] sm:$0xf]
        %v323 = vld [vmem:[%s250 + $0x2c] sm:$0xf]
        %v324 = vld [vmem:[%s250 + $0x30] sm:$0xf]
        %v325 = vld [vmem:[%s250 + $0x34] sm:$0xf]
        %v326 = vld [vmem:[%s250 + $0x38] sm:$0xf]
        %v327 = vld [vmem:[%s250 + $0x3c] sm:$0xf]
        %v344 = vunpack.c.l.b16 %v296
        %v345 = vunpack.c.l.b16 %v297
        %v346 = vunpack.c.l.b16 %v298
        %v347 = vunpack.c.l.b16 %v299
        %v348 = vunpack.c.l.b16 %v300
        %v349 = vunpack.c.l.b16 %v301
        %v350 = vunpack.c.l.b16 %v302
        %v351 = vunpack.c.l.b16 %v303
        %v352 = vunpack.c.l.b16 %v304
        %v353 = vunpack.c.l.b16 %v305
        %v354 = vunpack.c.l.b16 %v306
        %v355 = vunpack.c.l.b16 %v307
        %v356 = vunpack.c.l.b16 %v308
        %v357 = vunpack.c.l.b16 %v309
        %v358 = vunpack.c.l.b16 %v310
        %v359 = vunpack.c.l.b16 %v311
        %v360 = vpack.c.b16 %v345, %v344
        %v361 = vpack.c.b16 %v347, %v346
        %v362 = vpack.c.b16 %v349, %v348
        %v363 = vpack.c.b16 %v351, %v350
        %v364 = vpack.c.b16 %v353, %v352
        %v365 = vpack.c.b16 %v355, %v354
        %v366 = vpack.c.b16 %v357, %v356
        %v367 = vpack.c.b16 %v359, %v358
        %v392 = vunpack.c.l.b16 %v312
        %v393 = vunpack.c.l.b16 %v313
        %v394 = vunpack.c.l.b16 %v314
        %v395 = vunpack.c.l.b16 %v315
        %v396 = vunpack.c.l.b16 %v316
        %v397 = vunpack.c.l.b16 %v317
        %v398 = vunpack.c.l.b16 %v318
        %v399 = vunpack.c.l.b16 %v319
        %v400 = vunpack.c.l.b16 %v320
        %v401 = vunpack.c.l.b16 %v321
        %v402 = vunpack.c.l.b16 %v322
        %v403 = vunpack.c.l.b16 %v323
        %v404 = vunpack.c.l.b16 %v324
        %v405 = vunpack.c.l.b16 %v325
        %v406 = vunpack.c.l.b16 %v326
        %v407 = vunpack.c.l.b16 %v327
        %v408 = vpack.c.b16 %v393, %v392
        %v409 = vpack.c.b16 %v395, %v394
        %v410 = vpack.c.b16 %v397, %v396
        %v411 = vpack.c.b16 %v399, %v398
        %v412 = vpack.c.b16 %v401, %v400
        %v413 = vpack.c.b16 %v403, %v402
        %v414 = vpack.c.b16 %v405, %v404
        %v415 = vpack.c.b16 %v407, %v406
        %424 = vmatprep.subr.bf16.mxu0 0
        %425 = vmatpush1.bf16.msra.mxu0 %v415
        %426 = vmatprep.subr.bf16.mxu0 0
        %427 = vmatpush1.bf16.msra.mxu0 %v414
        %428 = vmatprep.subr.bf16.mxu0 0
        %429 = vmatpush1.bf16.msra.mxu0 %v413
        %430 = vmatprep.subr.bf16.mxu0 0
        %431 = vmatpush1.bf16.msra.mxu0 %v412
        %432 = vmatprep.subr.bf16.mxu0 0
        %433 = vmatpush1.bf16.msra.mxu0 %v411
        %434 = vmatprep.subr.bf16.mxu0 0
        %435 = vmatpush1.bf16.msra.mxu0 %v410
        %436 = vmatprep.subr.bf16.mxu0 0
        %437 = vmatpush1.bf16.msra.mxu0 %v409
        %438 = vmatprep.subr.bf16.mxu0 0
        %439 = vmatpush1.bf16.msra.mxu0 %v408
        %440 = vmatprep.subr.bf16.mxu0 0
        %441 = vmatpush2.bf16.msra.mxu0 0
        %442 = vmatprep.subr.bf16.mxu0 0
        %443 = vmatpush2.bf16.msra.mxu0 0
        %444 = vmatprep.subr.bf16.mxu0 0
        %445 = vmatpush2.bf16.msra.mxu0 0
        %446 = vmatprep.subr.bf16.mxu0 0
        %447 = vmatpush2.bf16.msra.mxu0 0
        %448 = vmatprep.subr.bf16.mxu0 0
        %449 = vmatpush2.bf16.msra.mxu0 0
        %450 = vmatprep.subr.bf16.mxu0 0
        %451 = vmatpush2.bf16.msra.mxu0 0
        %452 = vmatprep.subr.bf16.mxu0 0
        %453 = vmatpush2.bf16.msra.mxu0 0
        %454 = vmatprep.subr.bf16.mxu0 0
        %455 = vmatpush2.bf16.msra.mxu0 0
        %456 = vmatprep.mubr.bf16.mxu0 0
        %457 = vmatmul.mubr.bf16.gmra.mxu0 %v360
        %v458 = vpop.f32.mrf.mxu0
        %v459 = vadd.f32 0.0, %v458
        %v460 = vpop.f32.mrf.mxu0
        %v461 = vpop.f32.mrf.mxu0
        %v462 = vadd.f32 0.0, %v461
        %v463 = vpop.f32.mrf.mxu0
        %464 = vmatprep.mubr.bf16.mxu0 0
        %465 = vmatmul.mubr.bf16.gmra.mxu0 %v361
        %v466 = vpop.f32.mrf.mxu0
        %v467 = vadd.f32 0.0, %v466
        %v468 = vpop.f32.mrf.mxu0
        %v469 = vpop.f32.mrf.mxu0
        %v470 = vadd.f32 0.0, %v469
        %v471 = vpop.f32.mrf.mxu0
        %472 = vmatprep.mubr.bf16.mxu0 0
        %473 = vmatmul.mubr.bf16.gmra.mxu0 %v362
        %v474 = vpop.f32.mrf.mxu0
        %v475 = vadd.f32 0.0, %v474
        %v476 = vpop.f32.mrf.mxu0
        %v477 = vpop.f32.mrf.mxu0
        %v478 = vadd.f32 0.0, %v477
        %v479 = vpop.f32.mrf.mxu0
        %480 = vmatprep.mubr.bf16.mxu0 0
        %481 = vmatmul.mubr.bf16.gmra.mxu0 %v363
        %v482 = vpop.f32.mrf.mxu0
        %v483 = vadd.f32 0.0, %v482
        %v484 = vpop.f32.mrf.mxu0
        %v485 = vpop.f32.mrf.mxu0
        %v486 = vadd.f32 0.0, %v485
        %v487 = vpop.f32.mrf.mxu0
        %488 = vmatprep.mubr.bf16.mxu0 0
        %489 = vmatmul.mubr.bf16.gmra.mxu0 %v364
        %v490 = vpop.f32.mrf.mxu0
        %v491 = vadd.f32 0.0, %v490
        %v492 = vpop.f32.mrf.mxu0
        %v493 = vpop.f32.mrf.mxu0
        %v494 = vadd.f32 0.0, %v493
        %v495 = vpop.f32.mrf.mxu0
        %496 = vmatprep.mubr.bf16.mxu0 0
        %497 = vmatmul.mubr.bf16.gmra.mxu0 %v365
        %v498 = vpop.f32.mrf.mxu0
        %v499 = vadd.f32 0.0, %v498
        %v500 = vpop.f32.mrf.mxu0
        %v501 = vpop.f32.mrf.mxu0
        %v502 = vadd.f32 0.0, %v501
        %v503 = vpop.f32.mrf.mxu0
        %504 = vmatprep.mubr.bf16.mxu0 0
        %505 = vmatmul.mubr.bf16.gmra.mxu0 %v366
        %v506 = vpop.f32.mrf.mxu0
        %v507 = vadd.f32 0.0, %v506
        %v508 = vpop.f32.mrf.mxu0
        %v509 = vpop.f32.mrf.mxu0
        %v510 = vadd.f32 0.0, %v509
        %v511 = vpop.f32.mrf.mxu0
        %512 = vmatprep.mubr.bf16.mxu0 0
        %513 = vmatmul.mubr.bf16.gmra.mxu0 %v367
        %v514 = vpop.f32.mrf.mxu0
        %v515 = vadd.f32 0.0, %v514
        %v516 = vpop.f32.mrf.mxu0
        %v517 = vpop.f32.mrf.mxu0
        %v518 = vadd.f32 0.0, %v517
        %v519 = vpop.f32.mrf.mxu0
        %520 = vdwg.mxu0
        %v521 = vadd.f32 %v280, %v459
        %v522 = vadd.f32 %v281, %v462
        %v523 = vadd.f32 %v282, %v467
        %v524 = vadd.f32 %v283, %v470
        %v525 = vadd.f32 %v284, %v475
        %v526 = vadd.f32 %v285, %v478
        %v527 = vadd.f32 %v286, %v483
        %v528 = vadd.f32 %v287, %v486
        %v529 = vadd.f32 %v288, %v491
        %v530 = vadd.f32 %v289, %v494
        %v531 = vadd.f32 %v290, %v499
        %v532 = vadd.f32 %v291, %v502
        %v533 = vadd.f32 %v292, %v507
        %v534 = vadd.f32 %v293, %v510
        %v535 = vadd.f32 %v294, %v515
        %v536 = vadd.f32 %v295, %v518
        %vm537 = vcmask 261120
        %538 = vst.msk [vmem:[#allocation2] sm:$0xff] %vm537, %v521
        %539 = vst.msk [vmem:[#allocation2 + $0x8] sm:$0xff] %vm537, %v522
        %540 = vst.msk [vmem:[#allocation2 + $0x10] sm:$0xff] %vm537, %v523
        %541 = vst.msk [vmem:[#allocation2 + $0x18] sm:$0xff] %vm537, %v524
        %542 = vst.msk [vmem:[#allocation2 + $0x20] sm:$0xff] %vm537, %v525
        %543 = vst.msk [vmem:[#allocation2 + $0x28] sm:$0xff] %vm537, %v526
        %544 = vst.msk [vmem:[#allocation2 + $0x30] sm:$0xff] %vm537, %v527
        %545 = vst.msk [vmem:[#allocation2 + $0x38] sm:$0xff] %vm537, %v528
        %546 = vst.msk [vmem:[#allocation2 + $0x40] sm:$0xff] %vm537, %v529
        %547 = vst.msk [vmem:[#allocation2 + $0x48] sm:$0xff] %vm537, %v530
        %548 = vst.msk [vmem:[#allocation2 + $0x50] sm:$0xff] %vm537, %v531
        %549 = vst.msk [vmem:[#allocation2 + $0x58] sm:$0xff] %vm537, %v532
        %550 = vst.msk [vmem:[#allocation2 + $0x60] sm:$0xff] %vm537, %v533
        %551 = vst.msk [vmem:[#allocation2 + $0x68] sm:$0xff] %vm537, %v534
        %552 = vst.msk [vmem:[#allocation2 + $0x70] sm:$0xff] %vm537, %v535
        %553 = vst.msk [vmem:[#allocation2 + $0x78] sm:$0xff] %vm537, %v536
        %p554 = scmp.eq.s32.totalorder %s23, 1
        // Predicated region
        $region45: #{tpu_custom_call.1} parent=35 // pred_check
          %p555 = pneg %p554
        $region46: #{tpu_custom_call.1} parent=35 // pred_check_branch
          %557 = sbr.rel (%p555) target = $region48
        $region47: #{tpu_custom_call.1} parent=35 // pred_region
          %v558 = vld [vmem:[#allocation2] sm:$0xff]
          %v559 = vld [vmem:[#allocation2 + $0x8] sm:$0xff]
          %v560 = vld [vmem:[#allocation2 + $0x10] sm:$0xff]
          %v561 = vld [vmem:[#allocation2 + $0x18] sm:$0xff]
          %v562 = vld [vmem:[#allocation2 + $0x20] sm:$0xff]
          %v563 = vld [vmem:[#allocation2 + $0x28] sm:$0xff]
          %v564 = vld [vmem:[#allocation2 + $0x30] sm:$0xff]
          %v565 = vld [vmem:[#allocation2 + $0x38] sm:$0xff]
          %v566 = vld [vmem:[#allocation2 + $0x40] sm:$0xff]
          %v567 = vld [vmem:[#allocation2 + $0x48] sm:$0xff]
          %v568 = vld [vmem:[#allocation2 + $0x50] sm:$0xff]
          %v569 = vld [vmem:[#allocation2 + $0x58] sm:$0xff]
          %v570 = vld [vmem:[#allocation2 + $0x60] sm:$0xff]
          %v571 = vld [vmem:[#allocation2 + $0x68] sm:$0xff]
          %v572 = vld [vmem:[#allocation2 + $0x70] sm:$0xff]
          %v573 = vld [vmem:[#allocation2 + $0x78] sm:$0xff]
          %v574 = vld [vmem:[%s2] sm:$0x1]
          %v576 = vlaneseq
          %v577 = vshrl.u32 %v576, 7
          %v578 = vsub.s32 0, %v577
          %v579 = vrot.slane %v574, %v578
          %v581 = vadd.f32 %v558, %v579
          %v582 = vadd.f32 %v559, %v579
          %v583 = vadd.f32 %v560, %v579
          %v584 = vadd.f32 %v561, %v579
          %v585 = vadd.f32 %v562, %v579
          %v586 = vadd.f32 %v563, %v579
          %v587 = vadd.f32 %v564, %v579
          %v588 = vadd.f32 %v565, %v579
          %v589 = vadd.f32 %v566, %v579
          %v590 = vadd.f32 %v567, %v579
          %v591 = vadd.f32 %v568, %v579
          %v592 = vadd.f32 %v569, %v579
          %v593 = vadd.f32 %v570, %v579
          %v594 = vadd.f32 %v571, %v579
          %v595 = vadd.f32 %v572, %v579
          %v596 = vadd.f32 %v573, %v579
          %v597 = vmax.f32 %v581, 0.0
          %v598 = vmax.f32 %v582, 0.0
          %v599 = vmax.f32 %v583, 0.0
          %v600 = vmax.f32 %v584, 0.0
          %v601 = vmax.f32 %v585, 0.0
          %v602 = vmax.f32 %v586, 0.0
          %v603 = vmax.f32 %v587, 0.0
          %v604 = vmax.f32 %v588, 0.0
          %v605 = vmax.f32 %v589, 0.0
          %v606 = vmax.f32 %v590, 0.0
          %v607 = vmax.f32 %v591, 0.0
          %v608 = vmax.f32 %v592, 0.0
          %v609 = vmax.f32 %v593, 0.0
          %v610 = vmax.f32 %v594, 0.0
          %v611 = vmax.f32 %v595, 0.0
          %v612 = vmax.f32 %v596, 0.0
          %v613 = vpack.c.bf16 %v598, %v597
          %v614 = vpack.c.bf16 %v600, %v599
          %v615 = vpack.c.bf16 %v602, %v601
          %v616 = vpack.c.bf16 %v604, %v603
          %v617 = vpack.c.bf16 %v606, %v605
          %v618 = vpack.c.bf16 %v608, %v607
          %v619 = vpack.c.bf16 %v610, %v609
          %v620 = vpack.c.bf16 %v612, %v611
          %v621 = vld [vmem:[%s3] sm:$0xf]
          %v622 = vld [vmem:[%s3 + $0x4] sm:$0xf]
          %v623 = vld [vmem:[%s3 + $0x8] sm:$0xf]
          %v624 = vld [vmem:[%s3 + $0xc] sm:$0xf]
          %v629 = vunpack.c.l.b16 %v621
          %v630 = vunpack.c.l.b16 %v622
          %v631 = vunpack.c.l.b16 %v623
          %v632 = vunpack.c.l.b16 %v624
          %v633 = vpack.c.b16 %v630, %v629
          %v634 = vpack.c.b16 %v632, %v631
          %v638 = vsel %vm537, %v613, 0
          %v641 = vsel %vm537, %v614, 0
          %v644 = vsel %vm537, %v615, 0
          %v647 = vsel %vm537, %v616, 0
          %v650 = vsel %vm537, %v617, 0
          %v653 = vsel %vm537, %v618, 0
          %v656 = vsel %vm537, %v619, 0
          %v659 = vsel %vm537, %v620, 0
          %661 = vmatprep.subr.bf16.mxu0 0
          %662 = vmatpush1.bf16.msra.mxu0 0
          %663 = vmatprep.subr.bf16.mxu0 0
          %664 = vmatpush1.bf16.msra.mxu0 0
          %665 = vmatprep.subr.bf16.mxu0 0
          %666 = vmatpush1.bf16.msra.mxu0 0
          %667 = vmatprep.subr.bf16.mxu0 0
          %668 = vmatpush1.bf16.msra.mxu0 0
          %669 = vmatprep.subr.bf16.mxu0 0
          %670 = vmatpush1.bf16.msra.mxu0 0
          %671 = vmatprep.subr.bf16.mxu0 0
          %672 = vmatpush1.bf16.msra.mxu0 0
          %673 = vmatprep.subr.bf16.mxu0 0
          %674 = vmatpush1.bf16.msra.mxu0 %v634
          %675 = vmatprep.subr.bf16.mxu0 0
          %676 = vmatpush1.bf16.msra.mxu0 %v633
          %677 = vmatprep.subr.bf16.mxu0 0
          %678 = vmatpush2.bf16.msra.mxu0 0
          %679 = vmatprep.subr.bf16.mxu0 0
          %680 = vmatpush2.bf16.msra.mxu0 0
          %681 = vmatprep.subr.bf16.mxu0 0
          %682 = vmatpush2.bf16.msra.mxu0 0
          %683 = vmatprep.subr.bf16.mxu0 0
          %684 = vmatpush2.bf16.msra.mxu0 0
          %685 = vmatprep.subr.bf16.mxu0 0
          %686 = vmatpush2.bf16.msra.mxu0 0
          %687 = vmatprep.subr.bf16.mxu0 0
          %688 = vmatpush2.bf16.msra.mxu0 0
          %689 = vmatprep.subr.bf16.mxu0 0
          %690 = vmatpush2.bf16.msra.mxu0 0
          %691 = vmatprep.subr.bf16.mxu0 0
          %692 = vmatpush2.bf16.msra.mxu0 0
          %693 = vmatprep.mubr.bf16.mxu0 0
          %694 = vmatmul.mubr.bf16.gmra.mxu0 %v638
          %v695 = vpop.f32.mrf.mxu0
          %v696 = vadd.f32 0.0, %v695
          %v697 = vpop.f32.mrf.mxu0
          %v698 = vpop.f32.mrf.mxu0
          %v699 = vadd.f32 0.0, %v698
          %v700 = vpop.f32.mrf.mxu0
          %701 = vmatprep.mubr.bf16.mxu0 0
          %702 = vmatmul.mubr.bf16.gmra.mxu0 %v641
          %v703 = vpop.f32.mrf.mxu0
          %v704 = vadd.f32 0.0, %v703
          %v705 = vpop.f32.mrf.mxu0
          %v706 = vpop.f32.mrf.mxu0
          %v707 = vadd.f32 0.0, %v706
          %v708 = vpop.f32.mrf.mxu0
          %709 = vmatprep.mubr.bf16.mxu0 0
          %710 = vmatmul.mubr.bf16.gmra.mxu0 %v644
          %v711 = vpop.f32.mrf.mxu0
          %v712 = vadd.f32 0.0, %v711
          %v713 = vpop.f32.mrf.mxu0
          %v714 = vpop.f32.mrf.mxu0
          %v715 = vadd.f32 0.0, %v714
          %v716 = vpop.f32.mrf.mxu0
          %717 = vmatprep.mubr.bf16.mxu0 0
          %718 = vmatmul.mubr.bf16.gmra.mxu0 %v647
          %v719 = vpop.f32.mrf.mxu0
          %v720 = vadd.f32 0.0, %v719
          %v721 = vpop.f32.mrf.mxu0
          %v722 = vpop.f32.mrf.mxu0
          %v723 = vadd.f32 0.0, %v722
          %v724 = vpop.f32.mrf.mxu0
          %725 = vmatprep.mubr.bf16.mxu0 0
          %726 = vmatmul.mubr.bf16.gmra.mxu0 %v650
          %v727 = vpop.f32.mrf.mxu0
          %v728 = vadd.f32 0.0, %v727
          %v729 = vpop.f32.mrf.mxu0
          %v730 = vpop.f32.mrf.mxu0
          %v731 = vadd.f32 0.0, %v730
          %v732 = vpop.f32.mrf.mxu0
          %733 = vmatprep.mubr.bf16.mxu0 0
          %734 = vmatmul.mubr.bf16.gmra.mxu0 %v653
          %v735 = vpop.f32.mrf.mxu0
          %v736 = vadd.f32 0.0, %v735
          %v737 = vpop.f32.mrf.mxu0
          %v738 = vpop.f32.mrf.mxu0
          %v739 = vadd.f32 0.0, %v738
          %v740 = vpop.f32.mrf.mxu0
          %741 = vmatprep.mubr.bf16.mxu0 0
          %742 = vmatmul.mubr.bf16.gmra.mxu0 %v656
          %v743 = vpop.f32.mrf.mxu0
          %v744 = vadd.f32 0.0, %v743
          %v745 = vpop.f32.mrf.mxu0
          %v746 = vpop.f32.mrf.mxu0
          %v747 = vadd.f32 0.0, %v746
          %v748 = vpop.f32.mrf.mxu0
          %749 = vmatprep.mubr.bf16.mxu0 0
          %750 = vmatmul.mubr.bf16.gmra.mxu0 %v659
          %v751 = vpop.f32.mrf.mxu0
          %v752 = vadd.f32 0.0, %v751
          %v753 = vpop.f32.mrf.mxu0
          %v754 = vpop.f32.mrf.mxu0
          %v755 = vadd.f32 0.0, %v754
          %v756 = vpop.f32.mrf.mxu0
          %757 = vdwg.mxu0
          %v758 = vpack.c.bf16 %v699, %v696
          %v759 = vpack.c.bf16 %v707, %v704
          %v760 = vpack.c.bf16 %v715, %v712
          %v761 = vpack.c.bf16 %v723, %v720
          %v762 = vpack.c.bf16 %v731, %v728
          %v763 = vpack.c.bf16 %v739, %v736
          %v764 = vpack.c.bf16 %v747, %v744
          %v765 = vpack.c.bf16 %v755, %v752
          %v774 = vunpack.c.l.b16 %v758
          %v775 = vunpack.c.h.b16 %v758
          %v776 = vunpack.c.l.b16 %v759
          %v777 = vunpack.c.h.b16 %v759
          %v778 = vunpack.c.l.b16 %v760
          %v779 = vunpack.c.h.b16 %v760
          %v780 = vunpack.c.l.b16 %v761
          %v781 = vunpack.c.h.b16 %v761
          %v782 = vunpack.c.l.b16 %v762
          %v783 = vunpack.c.h.b16 %v762
          %v784 = vunpack.c.l.b16 %v763
          %v785 = vunpack.c.h.b16 %v763
          %v786 = vunpack.c.l.b16 %v764
          %v787 = vunpack.c.h.b16 %v764
          %v788 = vunpack.c.l.b16 %v765
          %v789 = vunpack.c.h.b16 %v765
          %v790 = vpack.c.b16 %v774, %v774
          %v791 = vpack.c.b16 %v775, %v775
          %v792 = vpack.c.b16 %v776, %v776
          %v793 = vpack.c.b16 %v777, %v777
          %v794 = vpack.c.b16 %v778, %v778
          %v795 = vpack.c.b16 %v779, %v779
          %v796 = vpack.c.b16 %v780, %v780
          %v797 = vpack.c.b16 %v781, %v781
          %v798 = vpack.c.b16 %v782, %v782
          %v799 = vpack.c.b16 %v783, %v783
          %v800 = vpack.c.b16 %v784, %v784
          %v801 = vpack.c.b16 %v785, %v785
          %v802 = vpack.c.b16 %v786, %v786
          %v803 = vpack.c.b16 %v787, %v787
          %v804 = vpack.c.b16 %v788, %v788
          %v805 = vpack.c.b16 %v789, %v789
          %vm822 = vcmask 257024
          %823 = vst.msk [vmem:[%s256] sm:$0xf] %vm822, %v790
          %824 = vst.msk [vmem:[%s256 + $0x4] sm:$0xf] %vm822, %v791
          %825 = vst.msk [vmem:[%s256 + $0x8] sm:$0xf] %vm822, %v792
          %826 = vst.msk [vmem:[%s256 + $0xc] sm:$0xf] %vm822, %v793
          %827 = vst.msk [vmem:[%s256 + $0x10] sm:$0xf] %vm822, %v794
          %828 = vst.msk [vmem:[%s256 + $0x14] sm:$0xf] %vm822, %v795
          %829 = vst.msk [vmem:[%s256 + $0x18] sm:$0xf] %vm822, %v796
          %830 = vst.msk [vmem:[%s256 + $0x1c] sm:$0xf] %vm822, %v797
          %831 = vst.msk [vmem:[%s256 + $0x20] sm:$0xf] %vm822, %v798
          %832 = vst.msk [vmem:[%s256 + $0x24] sm:$0xf] %vm822, %v799
          %833 = vst.msk [vmem:[%s256 + $0x28] sm:$0xf] %vm822, %v800
          %834 = vst.msk [vmem:[%s256 + $0x2c] sm:$0xf] %vm822, %v801
          %835 = vst.msk [vmem:[%s256 + $0x30] sm:$0xf] %vm822, %v802
          %836 = vst.msk [vmem:[%s256 + $0x34] sm:$0xf] %vm822, %v803
          %837 = vst.msk [vmem:[%s256 + $0x38] sm:$0xf] %vm822, %v804
          %838 = vst.msk [vmem:[%s256 + $0x3c] sm:$0xf] %vm822, %v805
        $region48: #{tpu_custom_call.1} parent=35 // pred_fallthru
          _
        %s839 = smul.u32 16, %s22
        %p840 = scmp.lt.s32.totalorder %s839, 31
        %s841 = scalar_select %p840, %s839, 31
        %s842 = smul.addr %s841, 4
        %s843 = scalar_lea.vmem %s4, %s842
        // Predicated region
        $region49: #{tpu_custom_call.1} parent=35 // pred_check
          %p844 = pneg %p144
        $region50: #{tpu_custom_call.1} parent=35 // pred_check_branch
          %846 = sbr.rel (%p844) target = $region52
        $region51: #{tpu_custom_call.1} parent=35 // pred_region
          %s847 = smul.u32 16, %s22
        $region52: #{tpu_custom_call.1} parent=35 // pred_fallthru
          _
      $region36: #{tpu_custom_call.1} parent=5 // pred_fallthru
        _
      %p848 = scmp.le.s32.totalorder 2, %s13
      // Predicated region
      $region53: #{tpu_custom_call.1} parent=5 // pred_check
        %p849 = pneg %p848
      $region54: #{tpu_custom_call.1} parent=5 // pred_check_branch
        %851 = sbr.rel (%p849) target = $region56
      $region55: #{tpu_custom_call.1} parent=5 // pred_region
        %s852 = ssub.s32 %s13, 2
        // Predicated region
        $region57: #{tpu_custom_call.1} parent=55 // pred_check
          %p853 = pneg %p150
        $region58: #{tpu_custom_call.1} parent=55 // pred_check_branch
          %855 = sbr.rel (%p853) target = $region60
        $region59: #{tpu_custom_call.1} parent=55 // pred_region
          %s856 = smul.u32 16, %s24
          %p857 = scmp.lt.s32.totalorder %s856, 31
          %s858 = scalar_select %p857, %s856, 31
          %s859 = smul.addr %s858, 4
          %s860 = scalar_lea.vmem %s4, %s859
        $region60: #{tpu_custom_call.1} parent=55 // pred_fallthru
          _
      $region56: #{tpu_custom_call.1} parent=5 // pred_fallthru
        _
    $region6: #{tpu_custom_call.1} parent=1 // loop_footer
      %s17 = sadd.s32 1, %s13
    $region7: #{tpu_custom_call.1} parent=1 // loop_footer_branch
      %12 = sbr.rel target = $region3
    $region8: #{tpu_custom_call.1} parent=1 // loop_exit
      _
    %861 = vsyncpa [#allocation4], 1
    %s862 = scalar_lea.sflag [#allocation4], 1
    %863 = vsyncpa %s862, 1

</llo_original>
